<compile_context>
chip_gen: v6e
topology: v6e:2x2x1
jax: 0.10.0
libtpu: 0.0.40
codegen_flags: <defaults>
</compile_context>

<pallas_src>
import functools

import jax
import jax.numpy as jnp
from jax import lax
from jax.experimental import pallas as pl
from jax.experimental.pallas import tpu as pltpu


def _mdd_kernel(*refs, margin, n_sample, n_class, tile_m, tiles_per_par,
                has_weights):
    if has_weights:
        (y_s_ref, y_s_adv_ref, y_t_ref, y_t_adv_ref, w_ref,
         o_ref, acc_ref) = refs
    else:
        y_s_ref, y_s_adv_ref, y_t_ref, y_t_adv_ref, o_ref, acc_ref = refs
        w_ref = None

    p = pl.program_id(0)              # partial-sum slice ("parallel" -> per-TC)
    j = pl.program_id(1)              # sample tile within the slice
    t = p * tiles_per_par + j         # unclamped global tile index

    @pl.when(j == 0)
    def _init():
        acc_ref[...] = jnp.zeros_like(acc_ref)

    y_s = y_s_ref[...].astype(jnp.float32)
    y_s_adv = y_s_adv_ref[...].astype(jnp.float32)
    y_t = y_t_ref[...].astype(jnp.float32)
    y_t_adv = y_t_adv_ref[...].astype(jnp.float32)

    col = lax.broadcasted_iota(jnp.int32, (tile_m, n_class), 1)

    # ---- source disparity: cross_entropy(y_s_adv, argmax_1(y_s)) ----------
    m_s = jnp.max(y_s, axis=1, keepdims=True)
    # first index attaining the row max (matches torch argmax tie-break)
    idx_s = jnp.min(jnp.where(y_s == m_s, col, n_class), axis=1, keepdims=True)
    pick_s = jnp.sum(jnp.where(col == idx_s, y_s_adv, 0.0),
                     axis=1, keepdims=True)           # adversarial logit @ pred
    m_sa = jnp.max(y_s_adv, axis=1, keepdims=True)
    lse_s = m_sa + jnp.log(jnp.sum(jnp.exp(y_s_adv - m_sa),
                                   axis=1, keepdims=True))
    src_loss = -margin * (lse_s - pick_s)             # (tile_m, 1)

    # ---- target disparity: shift_log(1 - softmax(y_t_adv))[argmax_1(y_t)] --
    m_t = jnp.max(y_t, axis=1, keepdims=True)
    idx_t = jnp.min(jnp.where(y_t == m_t, col, n_class), axis=1, keepdims=True)
    pick_t = jnp.sum(jnp.where(col == idx_t, y_t_adv, 0.0),
                     axis=1, keepdims=True)
    m_ta = jnp.max(y_t_adv, axis=1, keepdims=True)
    lse_t = m_ta + jnp.log(jnp.sum(jnp.exp(y_t_adv - m_ta),
                                   axis=1, keepdims=True))
    p_pick = jnp.exp(pick_t - lse_t)                  # softmax prob @ pred
    tgt_loss = jnp.log(jnp.minimum(1.0 - p_pick + 1e-6, 1.0))   # (tile_m, 1)

    if has_weights:
        w = w_ref[...].astype(jnp.float32)            # (tile_m, 2)
        per_row = src_loss * w[:, 0:1] + tgt_loss * w[:, 1:2]
    else:
        per_row = src_loss + tgt_loss                 # (tile_m, 1)

    # Mask padded rows of trailing / phantom tiles (select, so padded-garbage
    # NaN/inf cannot poison the sum).
    row = t * tile_m + lax.broadcasted_iota(jnp.int32, (tile_m, 1), 0)
    per_row = jnp.where(row < n_sample, per_row, 0.0)

    acc_ref[...] += per_row

    @pl.when(j == pl.num_programs(1) - 1)
    def _finalize():
        partial = jnp.sum(acc_ref[...])               # single reduce per slice
        o_ref[...] = jnp.full(o_ref.shape, partial, jnp.float32)


def margin_disparity_discrepancy(y_s, y_s_adv, y_t, y_t_adv,
                                 w_s=None, w_t=None, *, margin=4.0,
                                 reduction="mean", tile_m=None):
    """Pallas TPU forward of MarginDisparityDiscrepancy (classification MDD)."""
    n, c = y_s.shape
    for a in (y_s_adv, y_t, y_t_adv):
        assert a.shape == (n, c)
    if reduction not in ("mean", "sum"):
        # TODO(synk): reduction='none' would need an (N,) output path.
        raise NotImplementedError("reduction must be 'mean' or 'sum'")

    logits = (y_s, y_s_adv, y_t, y_t_adv)

    # Don't materialize / stream all-ones weights; pack real weights into one
    # (N, 2) array -> one DMA stream and one lane-padded VMEM buffer.
    has_weights = (w_s is not None) or (w_t is not None)
    if has_weights:
        ws = jnp.ones((n,), jnp.float32) if w_s is None else \
            jnp.asarray(w_s, jnp.float32).reshape(n)
        wt = jnp.ones((n,), jnp.float32) if w_t is None else \
            jnp.asarray(w_t, jnp.float32).reshape(n)
        w_packed = jnp.stack([ws, wt], axis=1)        # (N, 2) f32
    else:
        w_packed = None

    # Sublane-packing multiple for the narrowest logit dtype (f32:8, bf16:16,
    # int8/fp8:32) so sub-tiling never violates the (8,128) layout rule.
    sub = 8
    for a in logits:
        sub = max(sub, 32 // max(1, a.dtype.itemsize))

    # Adaptive sample-tile size from a VMEM budget that is safe on v7x (64 MiB
    # physical): 4 double-buffered logit tiles + (optional) double-buffered
    # lane-padded weight tile + lane-padded accumulator scratch <= ~44 MiB.
    if tile_m is None:
        budget = 44 * 1024 * 1024
        per_row = 0
        for a in logits:
            per_row += 2 * c * a.dtype.itemsize       # double-buffered logits
        if has_weights:
            per_row += 2 * 512                        # (tile_m,2) pads to 128 lanes
        per_row += 512                                # (tile_m,1) f32 accumulator
        tile_m = budget // per_row
        tile_m = min(max(sub, (tile_m // sub) * sub), 8192)
    if tile_m >= n:
        tile_m = n                                    # single full block
    else:
        tile_m = max(sub, (tile_m // sub) * sub)

    num_row_blocks = pl.cdiv(n, tile_m)
    n_par = 2 if num_row_blocks >= 2 else 1           # split across v7x's 2 TCs
    tiles_per_par = pl.cdiv(num_row_blocks, n_par)
    grid = (n_par, tiles_per_par)
    last_block = num_row_blocks - 1

    def row_block(p, j):
        # Clamp phantom tiles (n_par*tiles_per_par may exceed num_row_blocks);
        # their rows are fully masked in-kernel via the global row index.
        return jnp.minimum(p * tiles_per_par + j, last_block)

    logit_spec = pl.BlockSpec((tile_m, c), lambda p, j: (row_block(p, j), 0))
    weight_spec = pl.BlockSpec((tile_m, 2), lambda p, j: (row_block(p, j), 0))
    # Lane-dense (8,128) output block per parallel slice; summed in wrapper.
    out_spec = pl.BlockSpec((1, 8, 128), lambda p, j: (p, 0, 0))

    kernel = functools.partial(
        _mdd_kernel, margin=float(margin), n_sample=n, n_class=c,
        tile_m=tile_m, tiles_per_par=tiles_per_par, has_weights=has_weights)

    in_specs = [logit_spec, logit_spec, logit_spec, logit_spec]
    args = [y_s, y_s_adv, y_t, y_t_adv]
    if has_weights:
        in_specs.append(weight_spec)
        args.append(w_packed)

    bytes_in = sum(n * c * a.dtype.itemsize for a in logits)
    if has_weights:
        bytes_in += n * 8
    cost = pl.CostEstimate(flops=16 * n * c,
                           transcendentals=2 * n * c + 6 * n,
                           bytes_accessed=bytes_in + n_par * 8 * 128 * 4)

    # NOTE: pipeline_mode=pl.Buffered(3) on logit_spec is a further v7x knob if
    # DMA is still exposed after retiling; left at the default double-buffer.
    out = pl.pallas_call(
        kernel,
        out_shape=jax.ShapeDtypeStruct((n_par, 8, 128), jnp.float32),
        grid=grid,
        in_specs=in_specs,
        out_specs=out_spec,
        scratch_shapes=[pltpu.VMEM((tile_m, 1), jnp.float32)],
        compiler_params=pltpu.CompilerParams(
            dimension_semantics=("parallel", "arbitrary"),
            vmem_limit_bytes=48 * 1024 * 1024),
        cost_estimate=cost,
    )(*args)

    total = jnp.sum(out[:, 0, 0])                     # add per-core partials
    if reduction == "mean":
        total = total / jnp.float32(n)
    return total


def _reference(y_s, y_s_adv, y_t, y_t_adv, w_s=None, w_t=None, *, margin=4.0,
               reduction="mean"):
    """Pure-JAX reference mirroring the PyTorch MDD module (classification)."""
    y_s_adv = y_s_adv.astype(jnp.float32)
    y_t_adv = y_t_adv.astype(jnp.float32)
    pred_s = jnp.argmax(y_s, axis=1)
    log_p_s = jax.nn.log_softmax(y_s_adv, axis=1)
    ce = -jnp.take_along_axis(log_p_s, pred_s[:, None], axis=1)[:, 0]
    source_loss = -margin * ce
    pred_t = jnp.argmax(y_t, axis=1)
    p_t = jax.nn.softmax(y_t_adv, axis=1)
    p_pick = jnp.take_along_axis(p_t, pred_t[:, None], axis=1)[:, 0]
    target_loss = jnp.log(jnp.minimum(1.0 - p_pick + 1e-6, 1.0))
    if w_s is None:
        w_s = jnp.ones_like(source_loss)
    if w_t is None:
        w_t = jnp.ones_like(target_loss)
    loss = source_loss * w_s + target_loss * w_t
    if reduction == "mean":
        return jnp.mean(loss)
    if reduction == "sum":
        return jnp.sum(loss)
    return loss


if __name__ == "__main__":
    key = jax.random.PRNGKey(0)
    k1, k2, k3, k4, k5, k6 = jax.random.split(key, 6)
    n_sample, n_class = 8, 32
    margin = 4.0

    # Case 1: small batch, no instance weights (no-weight kernel variant).
    y_s = jax.random.normal(k1, (n_sample, n_class), jnp.float32)
    y_s_adv = jax.random.normal(k2, (n_sample, n_class), jnp.float32)
    y_t = jax.random.normal(k3, (n_sample, n_class), jnp.float32)
    y_t_adv = jax.random.normal(k4, (n_sample, n_class), jnp.float32)

    loss = margin_disparity_discrepancy(y_s, y_s_adv, y_t, y_t_adv,
                                        margin=margin)
    loss = jax.block_until_ready(loss)
    ref = _reference(y_s, y_s_adv, y_t, y_t_adv, margin=margin)
    assert jnp.allclose(loss, ref, rtol=1e-4, atol=1e-5), (loss, ref)

    # Case 2: multi-tile path with explicit weights, trailing partial tile,
    # and a phantom tile on the second parallel slice (3 real tiles, grid 2x2).
    n2 = 20
    y_s2 = jax.random.normal(k5, (n2, n_class), jnp.float32)
    y_s_adv2 = jax.random.normal(k6, (n2, n_class), jnp.float32)
    y_t2 = jax.random.normal(k2, (n2, n_class), jnp.float32)
    y_t_adv2 = jax.random.normal(k3, (n2, n_class), jnp.float32)
    w_s2 = jax.random.uniform(k4, (n2,), jnp.float32)
    w_t2 = jax.random.uniform(k1, (n2,), jnp.float32)
    loss2 = margin_disparity_discrepancy(y_s2, y_s_adv2, y_t2, y_t_adv2,
                                         w_s2, w_t2, margin=margin, tile_m=8)
    loss2 = jax.block_until_ready(loss2)
    ref2 = _reference(y_s2, y_s_adv2, y_t2, y_t_adv2, w_s2, w_t2,
                      margin=margin)
    assert jnp.allclose(loss2, ref2, rtol=1e-4, atol=1e-5), (loss2, ref2)

    # Case 3: 'sum' reduction, bf16 logits (native ingestion, upcast in-VMEM).
    y_s3 = y_s.astype(jnp.bfloat16)
    y_s_adv3 = y_s_adv.astype(jnp.bfloat16)
    y_t3 = y_t.astype(jnp.bfloat16)
    y_t_adv3 = y_t_adv.astype(jnp.bfloat16)
    loss3 = margin_disparity_discrepancy(y_s3, y_s_adv3, y_t3, y_t_adv3,
                                         margin=margin, reduction="sum")
    loss3 = jax.block_until_ready(loss3)
    ref3 = _reference(y_s3.astype(jnp.float32), y_s_adv3.astype(jnp.float32),
                      y_t3.astype(jnp.float32), y_t_adv3.astype(jnp.float32),
                      margin=margin, reduction="sum")
    assert jnp.allclose(loss3, ref3, rtol=2e-2, atol=2e-2), (loss3, ref3)

    print("KERNEL_OK")
</pallas_src>

<mosaic_0001>
module attributes {stable_mosaic.version = 11 : i64} {
  func.func @_mdd_kernel(%arg0: i32, %arg1: i32, %arg2: memref<8x32xf32, #tpu.memory_space<vmem>>, %arg3: memref<8x32xf32, #tpu.memory_space<vmem>>, %arg4: memref<8x32xf32, #tpu.memory_space<vmem>>, %arg5: memref<8x32xf32, #tpu.memory_space<vmem>>, %arg6: memref<1x8x128xf32, #tpu.memory_space<vmem>>, %arg7: memref<8x1xf32, #tpu.memory_space<vmem>>) attributes {dimension_semantics = [#tpu.dimension_semantics<parallel>, #tpu.dimension_semantics<arbitrary>], iteration_bounds = array<i64: 1, 1>, scalar_prefetch = 0 : i64, scratch_operands = 1 : i64, tpu.core_type = #tpu.core_type<tc>, window_params = [{transform_indices = @transform_0, window_bounds = array<i64: 8, 32>}, {transform_indices = @transform_1, window_bounds = array<i64: 8, 32>}, {transform_indices = @transform_2, window_bounds = array<i64: 8, 32>}, {transform_indices = @transform_3, window_bounds = array<i64: 8, 32>}, {transform_indices = @transform_4, window_bounds = array<i64: 1, 8, 128>}]} {
    %c1_i32 = arith.constant 1 : i32
    %0 = arith.muli %arg0, %c1_i32 : i32
    %1 = arith.addi %0, %arg1 : i32
    %c0_i32 = arith.constant 0 : i32
    %2 = arith.cmpi eq, %arg1, %c0_i32 : i32
    %3 = arith.extui %2 : i1 to i32
    %c0_i32_0 = arith.constant 0 : i32
    %4 = arith.cmpi ne, %3, %c0_i32_0 : i32
    scf.if %4 {
      %cst_32 = arith.constant 0.000000e+00 : f32
      %83 = vector.broadcast %cst_32 : f32 to vector<8x1xf32>
      %c0_33 = arith.constant 0 : index
      %c0_34 = arith.constant 0 : index
      %84 = vector.load %arg7[%c0_33, %c0_34] : memref<8x1xf32, #tpu.memory_space<vmem>>, vector<8x1xf32>
      tpu.vector_store %arg7[%c0_33, %c0_34], %83 {strides = array<i32>} : memref<8x1xf32, #tpu.memory_space<vmem>>, vector<8x1xf32>,
    } else {
    }
    %c0 = arith.constant 0 : index
    %c0_1 = arith.constant 0 : index
    %5 = vector.load %arg2[%c0, %c0_1] : memref<8x32xf32, #tpu.memory_space<vmem>>, vector<8x32xf32>
    %c0_2 = arith.constant 0 : index
    %c0_3 = arith.constant 0 : index
    %6 = vector.load %arg3[%c0_2, %c0_3] : memref<8x32xf32, #tpu.memory_space<vmem>>, vector<8x32xf32>
    %c0_4 = arith.constant 0 : index
    %c0_5 = arith.constant 0 : index
    %7 = vector.load %arg4[%c0_4, %c0_5] : memref<8x32xf32, #tpu.memory_space<vmem>>, vector<8x32xf32>
    %c0_6 = arith.constant 0 : index
    %c0_7 = arith.constant 0 : index
    %8 = vector.load %arg5[%c0_6, %c0_7] : memref<8x32xf32, #tpu.memory_space<vmem>>, vector<8x32xf32>
    %9 = tpu.iota {dimensions = array<i32: 1>} : vector<8x32xi32>
    %cst = arith.constant dense<0xFF800000> : vector<8xf32>
    %10 = vector.multi_reduction <maximumf>, %5, %cst [1] : vector<8x32xf32> to vector<8xf32>
    %11 = vector.shape_cast %10 : vector<8xf32> to vector<8x1xf32>
    %12 = vector.broadcast %11 : vector<8x1xf32> to vector<8x32xf32>
    %13 = arith.cmpf oeq, %5, %12 : vector<8x32xf32>
    %c32_i32 = arith.constant 32 : i32
    %14 = vector.broadcast %c32_i32 : i32 to vector<8x32xi32>
    %15 = arith.select %13, %9, %14 : vector<8x32xi1>, vector<8x32xi32>
    %cst_8 = arith.constant dense<2147483647> : vector<8xi32>
    %16 = vector.multi_reduction <minsi>, %15, %cst_8 [1] : vector<8x32xi32> to vector<8xi32>
    %17 = vector.shape_cast %16 : vector<8xi32> to vector<8x1xi32>
    %18 = vector.broadcast %17 : vector<8x1xi32> to vector<8x32xi32>
    %19 = arith.cmpi eq, %9, %18 : vector<8x32xi32>
    %cst_9 = arith.constant 0.000000e+00 : f32
    %20 = vector.broadcast %cst_9 : f32 to vector<8x32xf32>
    %21 = arith.select %19, %6, %20 : vector<8x32xi1>, vector<8x32xf32>
    %cst_10 = arith.constant dense<0.000000e+00> : vector<8xf32>
    %22 = vector.multi_reduction <add>, %21, %cst_10 [1] : vector<8x32xf32> to vector<8xf32>
    %23 = vector.shape_cast %22 : vector<8xf32> to vector<8x1xf32>
    %cst_11 = arith.constant dense<0xFF800000> : vector<8xf32>
    %24 = vector.multi_reduction <maximumf>, %6, %cst_11 [1] : vector<8x32xf32> to vector<8xf32>
    %25 = vector.shape_cast %24 : vector<8xf32> to vector<8x1xf32>
    %26 = vector.broadcast %25 : vector<8x1xf32> to vector<8x32xf32>
    %27 = arith.subf %6, %26 : vector<8x32xf32>
    %28 = math.exp %27 : vector<8x32xf32>
    %cst_12 = arith.constant dense<0.000000e+00> : vector<8xf32>
    %29 = vector.multi_reduction <add>, %28, %cst_12 [1] : vector<8x32xf32> to vector<8xf32>
    %30 = vector.shape_cast %29 : vector<8xf32> to vector<8x1xf32>
    %31 = math.log %30 : vector<8x1xf32>
    %32 = arith.addf %25, %31 : vector<8x1xf32>
    %33 = arith.subf %32, %23 : vector<8x1xf32>
    %cst_13 = arith.constant -4.000000e+00 : f32
    %34 = vector.broadcast %cst_13 : f32 to vector<8x1xf32>
    %35 = arith.mulf %34, %33 : vector<8x1xf32>
    %cst_14 = arith.constant dense<0xFF800000> : vector<8xf32>
    %36 = vector.multi_reduction <maximumf>, %7, %cst_14 [1] : vector<8x32xf32> to vector<8xf32>
    %37 = vector.shape_cast %36 : vector<8xf32> to vector<8x1xf32>
    %38 = vector.broadcast %37 : vector<8x1xf32> to vector<8x32xf32>
    %39 = arith.cmpf oeq, %7, %38 : vector<8x32xf32>
    %c32_i32_15 = arith.constant 32 : i32
    %40 = vector.broadcast %c32_i32_15 : i32 to vector<8x32xi32>
    %41 = arith.select %39, %9, %40 : vector<8x32xi1>, vector<8x32xi32>
    %cst_16 = arith.constant dense<2147483647> : vector<8xi32>
    %42 = vector.multi_reduction <minsi>, %41, %cst_16 [1] : vector<8x32xi32> to vector<8xi32>
    %43 = vector.shape_cast %42 : vector<8xi32> to vector<8x1xi32>
    %44 = vector.broadcast %43 : vector<8x1xi32> to vector<8x32xi32>
    %45 = arith.cmpi eq, %9, %44 : vector<8x32xi32>
    %cst_17 = arith.constant 0.000000e+00 : f32
    %46 = vector.broadcast %cst_17 : f32 to vector<8x32xf32>
    %47 = arith.select %45, %8, %46 : vector<8x32xi1>, vector<8x32xf32>
    %cst_18 = arith.constant dense<0.000000e+00> : vector<8xf32>
    %48 = vector.multi_reduction <add>, %47, %cst_18 [1] : vector<8x32xf32> to vector<8xf32>
    %49 = vector.shape_cast %48 : vector<8xf32> to vector<8x1xf32>
    %cst_19 = arith.constant dense<0xFF800000> : vector<8xf32>
    %50 = vector.multi_reduction <maximumf>, %8, %cst_19 [1] : vector<8x32xf32> to vector<8xf32>
    %51 = vector.shape_cast %50 : vector<8xf32> to vector<8x1xf32>
    %52 = vector.broadcast %51 : vector<8x1xf32> to vector<8x32xf32>
    %53 = arith.subf %8, %52 : vector<8x32xf32>
    %54 = math.exp %53 : vector<8x32xf32>
    %cst_20 = arith.constant dense<0.000000e+00> : vector<8xf32>
    %55 = vector.multi_reduction <add>, %54, %cst_20 [1] : vector<8x32xf32> to vector<8xf32>
    %56 = vector.shape_cast %55 : vector<8xf32> to vector<8x1xf32>
    %57 = math.log %56 : vector<8x1xf32>
    %58 = arith.addf %51, %57 : vector<8x1xf32>
    %59 = arith.subf %49, %58 : vector<8x1xf32>
    %60 = math.exp %59 : vector<8x1xf32>
    %cst_21 = arith.constant 1.000000e+00 : f32
    %61 = vector.broadcast %cst_21 : f32 to vector<8x1xf32>
    %62 = arith.subf %61, %60 : vector<8x1xf32>
    %cst_22 = arith.constant 9.99999997E-7 : f32
    %63 = vector.broadcast %cst_22 : f32 to vector<8x1xf32>
    %64 = arith.addf %62, %63 : vector<8x1xf32>
    %cst_23 = arith.constant 1.000000e+00 : f32
    %65 = vector.broadcast %cst_23 : f32 to vector<8x1xf32>
    %66 = arith.minimumf %64, %65 : vector<8x1xf32>
    %67 = math.log %66 : vector<8x1xf32>
    %68 = arith.addf %35, %67 : vector<8x1xf32>
    %c8_i32 = arith.constant 8 : i32
    %69 = arith.muli %1, %c8_i32 : i32
    %70 = tpu.iota {dimensions = array<i32: 0>} : vector<8x1xi32>
    %71 = vector.broadcast %69 : i32 to vector<8x1xi32>
    %72 = arith.addi %71, %70 : vector<8x1xi32>
    %c8_i32_24 = arith.constant 8 : i32
    %73 = vector.broadcast %c8_i32_24 : i32 to vector<8x1xi32>
    %74 = arith.cmpi slt, %72, %73 : vector<8x1xi32>
    %cst_25 = arith.constant 0.000000e+00 : f32
    %75 = vector.broadcast %cst_25 : f32 to vector<8x1xf32>
    %76 = arith.select %74, %68, %75 : vector<8x1xi1>, vector<8x1xf32>
    %c0_26 = arith.constant 0 : index
    %c0_27 = arith.constant 0 : index
    %77 = vector.load %arg7[%c0_26, %c0_27] : memref<8x1xf32, #tpu.memory_space<vmem>>, vector<8x1xf32>
    %78 = arith.addf %77, %76 : vector<8x1xf32>
    %c0_28 = arith.constant 0 : index
    %c0_29 = arith.constant 0 : index
    %79 = vector.load %arg7[%c0_28, %c0_29] : memref<8x1xf32, #tpu.memory_space<vmem>>, vector<8x1xf32>
    tpu.vector_store %arg7[%c0_28, %c0_29], %78 {strides = array<i32>} : memref<8x1xf32, #tpu.memory_space<vmem>>, vector<8x1xf32>,
    %c0_i32_30 = arith.constant 0 : i32
    %80 = arith.cmpi eq, %arg1, %c0_i32_30 : i32
    %81 = arith.extui %80 : i1 to i32
    %c0_i32_31 = arith.constant 0 : i32
    %82 = arith.cmpi ne, %81, %c0_i32_31 : i32
    scf.if %82 {
      %c0_32 = arith.constant 0 : index
      %c0_33 = arith.constant 0 : index
      %83 = vector.load %arg7[%c0_32, %c0_33] : memref<8x1xf32, #tpu.memory_space<vmem>>, vector<8x1xf32>
      %84 = vector.shape_cast %83 : vector<8x1xf32> to vector<1x8x1xf32>
      %cst_34 = arith.constant dense<0.000000e+00> : vector<1xf32>
      %85 = vector.multi_reduction <add>, %84, %cst_34 [1, 2] : vector<1x8x1xf32> to vector<1xf32>
      %86 = vector.shape_cast %85 : vector<1xf32> to vector<1x1x1xf32>
      %87 = vector.extract %86[0, 0, 0] : f32 from vector<1x1x1xf32>
      %88 = vector.broadcast %87 : f32 to vector<1x8x128xf32>
      %c0_35 = arith.constant 0 : index
      %c0_36 = arith.constant 0 : index
      %c0_37 = arith.constant 0 : index
      %89 = vector.load %arg6[%c0_35, %c0_36, %c0_37] : memref<1x8x128xf32, #tpu.memory_space<vmem>>, vector<1x8x128xf32>
      tpu.vector_store %arg6[%c0_35, %c0_36, %c0_37], %88 {strides = array<i32>} : memref<1x8x128xf32, #tpu.memory_space<vmem>>, vector<1x8x128xf32>,
    } else {
    }
    return
  }
  func.func @transform_0(%arg0: i32, %arg1: i32) -> (i32, i32) {
    %c1_i32 = arith.constant 1 : i32
    %0 = arith.muli %arg0, %c1_i32 : i32
    %1 = arith.addi %0, %arg1 : i32
    %c0_i32 = arith.constant 0 : i32
    %2 = arith.minsi %1, %c0_i32 : i32
    %c0_i32_0 = arith.constant 0 : i32
    %c0_i32_1 = arith.constant 0 : i32
    return %2, %c0_i32_0 : i32, i32
  }
  func.func @transform_1(%arg0: i32, %arg1: i32) -> (i32, i32) {
    %c1_i32 = arith.constant 1 : i32
    %0 = arith.muli %arg0, %c1_i32 : i32
    %1 = arith.addi %0, %arg1 : i32
    %c0_i32 = arith.constant 0 : i32
    %2 = arith.minsi %1, %c0_i32 : i32
    %c0_i32_0 = arith.constant 0 : i32
    %c0_i32_1 = arith.constant 0 : i32
    return %2, %c0_i32_0 : i32, i32
  }
  func.func @transform_2(%arg0: i32, %arg1: i32) -> (i32, i32) {
    %c1_i32 = arith.constant 1 : i32
    %0 = arith.muli %arg0, %c1_i32 : i32
    %1 = arith.addi %0, %arg1 : i32
    %c0_i32 = arith.constant 0 : i32
    %2 = arith.minsi %1, %c0_i32 : i32
    %c0_i32_0 = arith.constant 0 : i32
    %c0_i32_1 = arith.constant 0 : i32
    return %2, %c0_i32_0 : i32, i32
  }
  func.func @transform_3(%arg0: i32, %arg1: i32) -> (i32, i32) {
    %c1_i32 = arith.constant 1 : i32
    %0 = arith.muli %arg0, %c1_i32 : i32
    %1 = arith.addi %0, %arg1 : i32
    %c0_i32 = arith.constant 0 : i32
    %2 = arith.minsi %1, %c0_i32 : i32
    %c0_i32_0 = arith.constant 0 : i32
    %c0_i32_1 = arith.constant 0 : i32
    return %2, %c0_i32_0 : i32, i32
  }
  func.func @transform_4(%arg0: i32, %arg1: i32) -> (i32, i32, i32) {
    %c0_i32 = arith.constant 0 : i32
    %c0_i32_0 = arith.constant 0 : i32
    %c0_i32_1 = arith.constant 0 : i32
    return %arg0, %c0_i32, %c0_i32_0 : i32, i32, i32
  }
}

</mosaic_0001>

<llo_original>
// kernel: tpu_custom_call.1
$region0: #{tpu_custom_call.1}
  #allocation0 [shape = 'u32[]', space=smem, size = 0x4, offset = 0x4, fixed_abs, tag = 'smem constant byte address 0x4 - core index']
  #allocation1 [shape = 'u32[144,128]{1,0:T(1,128)}', space=vmem, size = 0x12000, scoped, tag = 'internal scratch']
  #allocation2 [shape = 'f32[8,1]{1,0:T(8,128)}', space=vmem, size = 0x1000, scoped, tag = 'scratch operand']
  %s0 = inlined_call_operand.hbm [shape: f32[8,32], index: 0, kind: input, shape index: {}]
  %s1 = inlined_call_operand.hbm [shape: f32[8,32], index: 1, kind: input, shape index: {}]
  %s2 = inlined_call_operand.hbm [shape: f32[8,32], index: 2, kind: input, shape index: {}]
  %s3 = inlined_call_operand.hbm [shape: f32[8,32], index: 3, kind: input, shape index: {}]
  %s4 = inlined_call_operand.hbm [shape: f32[1,8,128], index: 4, kind: output, shape index: {}]
  %s5 = sld [smem:[#allocation0]]
  $region50: #{tpu_custom_call.1} parent=0
    _
  %s7 = ssub.s32 1, %s5
  %s8 = scalar_select 0, %s7, %s5
  $region1: #{tpu_custom_call.1} parent=0
    #allocation3 [shape = 'u8[4096]{0}', space=vmem, size = 0x1000, scoped, tag = 'input window, operand 0, single buffered']
    #allocation4 [shape = 's32[1]{0}', space=sflag, size = 0x4, scoped, tag = 'scoped memory for tpu_custom_call.1']
    #allocation5 [shape = 's32[1]{0}', space=sflag, size = 0x4, scoped, tag = 'scoped memory for tpu_custom_call.1']
    #allocation6 [shape = 'u8[4096]{0}', space=vmem, size = 0x1000, scoped, tag = 'input window, operand 1, single buffered']
    #allocation7 [shape = 's32[1]{0}', space=sflag, size = 0x4, scoped, tag = 'scoped memory for tpu_custom_call.1']
    #allocation8 [shape = 'u8[4096]{0}', space=vmem, size = 0x1000, scoped, tag = 'input window, operand 2, single buffered']
    #allocation9 [shape = 'u8[4096]{0}', space=vmem, size = 0x1000, scoped, tag = 'input window, operand 3, single buffered']
    #allocation10 [shape = 's32[1]{0}', space=sflag, size = 0x4, scoped, tag = 'scoped memory for tpu_custom_call.1']
    #allocation11 [shape = 'u8[4096]{0}', space=vmem, size = 0x1000, scoped, tag = 'output window, operand 0, single buffered']
    %9 = vsyncpa [#allocation4], 0
    %10 = vsyncpa [#allocation7], 0
    %11 = vsyncpa [#allocation10], 0
    %12 = vsyncpa [#allocation5], 0
    // Predicated region
    $region2: #{tpu_custom_call.1} parent=1 // pred_check
      _
    $region3: #{tpu_custom_call.1} parent=1 // pred_check_branch
      %14 = sbr.rel (0) target = $region5
    $region4: #{tpu_custom_call.1} parent=1 // pred_region
      %s15 = sadd.s32 0, 0
      %p16 = scmp.lt.s32.totalorder %s15, 0
      %s17 = scalar_select %p16, %s15, 0
      %s19 = ssub.s32 128, 128
      %20 = vsyncadd [#allocation4], %s19
      %s21 = smul.addr %s17, 128
      %s22 = scalar_lea.hbm %s0, %s21
      %s24 = sshll.u32 [#allocation3], 4
      %s25 = int_to_ptr.vmem [resolvable:$true] %s24
      %27 = dma.hbm_to_vmem [thread:$0]  %s22, 128, %s25, [#allocation4]
    $region5: #{tpu_custom_call.1} parent=1 // pred_fallthru
      _
    // Predicated region
    $region6: #{tpu_custom_call.1} parent=1 // pred_check
      _
    $region7: #{tpu_custom_call.1} parent=1 // pred_check_branch
      %29 = sbr.rel (0) target = $region9
    $region8: #{tpu_custom_call.1} parent=1 // pred_region
      %s30 = sadd.s32 0, 0
      %p31 = scmp.lt.s32.totalorder %s30, 0
      %s32 = scalar_select %p31, %s30, 0
      %s34 = ssub.s32 128, 128
      %35 = vsyncadd [#allocation7], %s34
      %s36 = smul.addr %s32, 128
      %s37 = scalar_lea.hbm %s1, %s36
      %s39 = sshll.u32 [#allocation6], 4
      %s40 = int_to_ptr.vmem [resolvable:$true] %s39
      %42 = dma.hbm_to_vmem [thread:$0]  %s37, 128, %s40, [#allocation7]
    $region9: #{tpu_custom_call.1} parent=1 // pred_fallthru
      _
    // Predicated region
    $region10: #{tpu_custom_call.1} parent=1 // pred_check
      _
    $region11: #{tpu_custom_call.1} parent=1 // pred_check_branch
      %44 = sbr.rel (0) target = $region13
    $region12: #{tpu_custom_call.1} parent=1 // pred_region
      %s45 = sadd.s32 0, 0
      %p46 = scmp.lt.s32.totalorder %s45, 0
      %s47 = scalar_select %p46, %s45, 0
      %s49 = ssub.s32 128, 128
      %50 = vsyncadd [#allocation7], %s49
      %s51 = smul.addr %s47, 128
      %s52 = scalar_lea.hbm %s2, %s51
      %s54 = sshll.u32 [#allocation8], 4
      %s55 = int_to_ptr.vmem [resolvable:$true] %s54
      %57 = dma.hbm_to_vmem [thread:$0]  %s52, 128, %s55, [#allocation7]
    $region13: #{tpu_custom_call.1} parent=1 // pred_fallthru
      _
    // Predicated region
    $region14: #{tpu_custom_call.1} parent=1 // pred_check
      _
    $region15: #{tpu_custom_call.1} parent=1 // pred_check_branch
      %59 = sbr.rel (0) target = $region17
    $region16: #{tpu_custom_call.1} parent=1 // pred_region
      %s60 = sadd.s32 0, 0
      %p61 = scmp.lt.s32.totalorder %s60, 0
      %s62 = scalar_select %p61, %s60, 0
      %s64 = ssub.s32 128, 128
      %65 = vsyncadd [#allocation10], %s64
      %s66 = smul.addr %s62, 128
      %s67 = scalar_lea.hbm %s3, %s66
      %s69 = sshll.u32 [#allocation9], 4
      %s70 = int_to_ptr.vmem [resolvable:$true] %s69
      %72 = dma.hbm_to_vmem [thread:$0]  %s67, 128, %s70, [#allocation10]
    $region17: #{tpu_custom_call.1} parent=1 // pred_fallthru
      _
    // Predicated region
    $region18: #{tpu_custom_call.1} parent=1 // pred_check
      _
    $region19: #{tpu_custom_call.1} parent=1 // pred_check_branch
      %74 = sbr.rel (0) target = $region21
    $region20: #{tpu_custom_call.1} parent=1 // pred_region
      %75 = dma.done [#allocation4], 128
    $region21: #{tpu_custom_call.1} parent=1 // pred_fallthru
      _
    // Predicated region
    $region22: #{tpu_custom_call.1} parent=1 // pred_check
      _
    $region23: #{tpu_custom_call.1} parent=1 // pred_check_branch
      %77 = sbr.rel (0) target = $region25
    $region24: #{tpu_custom_call.1} parent=1 // pred_region
      %78 = dma.done [#allocation7], 128
    $region25: #{tpu_custom_call.1} parent=1 // pred_fallthru
      _
    // Predicated region
    $region26: #{tpu_custom_call.1} parent=1 // pred_check
      _
    $region27: #{tpu_custom_call.1} parent=1 // pred_check_branch
      %80 = sbr.rel (0) target = $region29
    $region28: #{tpu_custom_call.1} parent=1 // pred_region
      %81 = dma.done [#allocation7], 128
    $region29: #{tpu_custom_call.1} parent=1 // pred_fallthru
      _
    // Predicated region
    $region30: #{tpu_custom_call.1} parent=1 // pred_check
      _
    $region31: #{tpu_custom_call.1} parent=1 // pred_check_branch
      %83 = sbr.rel (0) target = $region33
    $region32: #{tpu_custom_call.1} parent=1 // pred_region
      %84 = dma.done [#allocation10], 128
    $region33: #{tpu_custom_call.1} parent=1 // pred_fallthru
      _
    %s85 = sadd.s32 0, 0
    %p86 = scmp.lt.s32.totalorder %s85, 0
    %s87 = scalar_select %p86, %s85, 0
    %s88 = sadd.s32 0, 0
    %p89 = scmp.lt.s32.totalorder %s88, 0
    %s90 = scalar_select %p89, %s88, 0
    %s91 = sadd.s32 0, 0
    %p92 = scmp.lt.s32.totalorder %s91, 0
    %s93 = scalar_select %p92, %s91, 0
    %s94 = sadd.s32 0, 0
    %p95 = scmp.lt.s32.totalorder %s94, 0
    %s96 = scalar_select %p95, %s94, 0
    %s97 = sadd.s32 0, 0
    %p98 = scmp.eq.s32.totalorder 0, 0
    // Predicated region
    $region34: #{tpu_custom_call.1} parent=1 // pred_check
      %p99 = pneg %p98
    $region35: #{tpu_custom_call.1} parent=1 // pred_check_branch
      %101 = sbr.rel (%p99) target = $region37
    $region36: #{tpu_custom_call.1} parent=1 // pred_region
      %vm102 = vcmask 7168
      %103 = vst.msk [vmem:[#allocation2] sm:$0xff] %vm102, 0.0
    $region37: #{tpu_custom_call.1} parent=1 // pred_fallthru
      _
    %v104 = vld [vmem:[#allocation3] sm:$0xff]
    %v105 = vld [vmem:[#allocation6] sm:$0xff]
    %v106 = vld [vmem:[#allocation8] sm:$0xff]
    %v107 = vld [vmem:[#allocation9] sm:$0xff]
    %v108 = vlaneseq
    %v109 = vand.u32 %v108, 127
    %vm110 = vcmask 261120
    %v111 = vsel %vm110, %v104, -inf
    %112 = vmax.xlane.f32.xlu0 %v111
    %v113 = vpop.xlane.xlu0 %112
    %vm114 = vcmp.eq.f32.partialorder %v104, %v113
    %v115 = vsel %vm114, %v109, 32
    %v116 = vsel %vm110, %v115, 2147483647
    %v117 = vand.u32 %v116, 65535
    %v118 = vshra.s32 %v116, 16
    %v119 = vcvt.s32.f32 %v117
    %v120 = vcvt.s32.f32 %v118
    %121 = vmin.xlane.f32.xlu0 %v120
    %v122 = vpop.xlane.xlu0 %121
    %vm123 = vcmp.eq.f32.partialorder %v120, %v122
    %v124 = vsel %vm123, %v119, inf
    %125 = vmin.xlane.f32.xlu0 %v124
    %v126 = vpop.xlane.xlu0 %125
    %v127 = vcvt.f32.s32 %v126
    %v128 = vcvt.f32.s32 %v122
    %v129 = vshll.u32 %v128, 16
    %v130 = vadd.s32 %v129, %v127
    %vm131 = vcmp.eq.s32.totalorder %v109, %v130
    %v132 = vsel %vm131, %v105, 0.0
    %v133 = vsel %vm110, %v132, 0.0
    %134 = vadd.xlane.f32.xlu0 %v133
    %v135 = vpop.xlane.xlu0 %134
    %v136 = vsel %vm110, %v105, -inf
    %137 = vmax.xlane.f32.xlu0 %v136
    %v138 = vpop.xlane.xlu0 %137
    %v139 = vsub.f32 %v105, %v138
    %v140 = vmul.f32 %v139, 1.442695
    %v141 = vpow.pop %v140
    %v142 = vsel %vm110, %v141, 0.0
    %143 = vadd.xlane.f32.xlu0 %v142
    %v144 = vpop.xlane.xlu0 %143
    %v145 = vlog2.pop %v144
    %v146 = vmul.f32 %v145, 0.6931472
    %v147 = vadd.f32 %v138, %v146
    %v148 = vsub.f32 %v147, %v135
    %v149 = vmul.f32 %v148, -4.0
    %v150 = vsel %vm110, %v106, -inf
    %151 = vmax.xlane.f32.xlu0 %v150
    %v152 = vpop.xlane.xlu0 %151
    %vm153 = vcmp.eq.f32.partialorder %v106, %v152
    %v154 = vsel %vm153, %v109, 32
    %v155 = vsel %vm110, %v154, 2147483647
    %v156 = vand.u32 %v155, 65535
    %v157 = vshra.s32 %v155, 16
    %v158 = vcvt.s32.f32 %v156
    %v159 = vcvt.s32.f32 %v157
    %160 = vmin.xlane.f32.xlu0 %v159
    %v161 = vpop.xlane.xlu0 %160
    %vm162 = vcmp.eq.f32.partialorder %v159, %v161
    %v163 = vsel %vm162, %v158, inf
    %164 = vmin.xlane.f32.xlu0 %v163
    %v165 = vpop.xlane.xlu0 %164
    %v166 = vcvt.f32.s32 %v165
    %v167 = vcvt.f32.s32 %v161
    %v168 = vshll.u32 %v167, 16
    %v169 = vadd.s32 %v168, %v166
    %vm170 = vcmp.eq.s32.totalorder %v109, %v169
    %v171 = vsel %vm170, %v107, 0.0
    %v172 = vsel %vm110, %v171, 0.0
    %173 = vadd.xlane.f32.xlu0 %v172
    %v174 = vpop.xlane.xlu0 %173
    %v175 = vsel %vm110, %v107, -inf
    %176 = vmax.xlane.f32.xlu0 %v175
    %v177 = vpop.xlane.xlu0 %176
    %v178 = vsub.f32 %v107, %v177
    %v179 = vmul.f32 %v178, 1.442695
    %v180 = vpow.pop %v179
    %v181 = vsel %vm110, %v180, 0.0
    %182 = vadd.xlane.f32.xlu0 %v181
    %v183 = vpop.xlane.xlu0 %182
    %v184 = vlog2.pop %v183
    %v185 = vmul.f32 %v184, 0.6931472
    %v186 = vadd.f32 %v177, %v185
    %v187 = vsub.f32 %v174, %v186
    %v188 = vmul.f32 %v187, 1.442695
    %v189 = vpow.pop %v188
    %v190 = vsub.f32 1.0, %v189
    %v191 = vadd.f32 %v190, 1e-06
    %v192 = vmin.f32 %v191, 1.0
    %v193 = vlog2.pop %v192
    %v194 = vmul.f32 %v193, 0.6931472
    %v195 = vadd.f32 %v149, %v194
    %s196 = smul.u32 %s97, 8
    %v197 = vlaneseq
    %v198 = vshrl.u32 %v197, 7
    %v199 = vstv %s196
    %v200 = vadd.s32 %v199, %v198
    %vm201 = vcmp.lt.s32.totalorder %v200, 8
    %v202 = vsel %vm201, %v195, 0.0
    %v203 = vld [vmem:[#allocation2] sm:$0xff]
    %v204 = vadd.f32 %v203, %v202
    %vm205 = vcmask 7168
    %206 = vst.msk [vmem:[#allocation2] sm:$0xff] %vm205, %v204
    // Predicated region
    $region38: #{tpu_custom_call.1} parent=1 // pred_check
      %p207 = pneg %p98
    $region39: #{tpu_custom_call.1} parent=1 // pred_check_branch
      %209 = sbr.rel (%p207) target = $region41
    $region40: #{tpu_custom_call.1} parent=1 // pred_region
      %v210 = vld [vmem:[#allocation2] sm:$0xff]
      %v211 = vsel %vm205, %v210, 0.0
      %212 = vadd.xlane.f32.xlu0 %v211
      %v213 = vpop.xlane.xlu0 %212
      %v214 = vrot.slane %v213, 4
      %v215 = vadd.f32 %v213, %v214
      %v216 = vrot.slane %v215, 2
      %v217 = vadd.f32 %v215, %v216
      %v218 = vrot.slane %v217, 1
      %v219 = vadd.f32 %v217, %v218
      %s220 = vtos %v219
      %v221 = vstv %s220
      %222 = vst [vmem:[#allocation11] sm:$0xff] %v221
    $region41: #{tpu_custom_call.1} parent=1 // pred_fallthru
      _
    // Predicated region
    $region42: #{tpu_custom_call.1} parent=1 // pred_check
      _
    $region43: #{tpu_custom_call.1} parent=1 // pred_check_branch
      %224 = sbr.rel (0) target = $region45
    $region44: #{tpu_custom_call.1} parent=1 // pred_region
      %s226 = ssub.s32 128, 128
      %227 = vsyncadd [#allocation5], %s226
      %s229 = sshll.u32 [#allocation11], 4
      %s230 = int_to_ptr.vmem [resolvable:$true] %s229
      %232 = dma.vmem_to_hbm [thread:$0]  %s230, 128, %s4, [#allocation5]
    $region45: #{tpu_custom_call.1} parent=1 // pred_fallthru
      _
    // Predicated region
    $region46: #{tpu_custom_call.1} parent=1 // pred_check
      _
    $region47: #{tpu_custom_call.1} parent=1 // pred_check_branch
      %234 = sbr.rel (0) target = $region49
    $region48: #{tpu_custom_call.1} parent=1 // pred_region
      %235 = dma.done [#allocation5], 128
    $region49: #{tpu_custom_call.1} parent=1 // pred_fallthru
      _
    %236 = vsyncpa [#allocation4], 1
    %237 = vsyncpa [#allocation7], 1
    %238 = vsyncpa [#allocation10], 1
    %239 = vsyncpa [#allocation5], 1

</llo_original>
